<compile_context>
chip_gen: v5e
topology: v5e:2x2
jax: 0.10.0
libtpu: 0.0.40
codegen_flags: <defaults>
</compile_context>

<pallas_src>
import functools

import jax
import jax.numpy as jnp
from jax import lax
from jax.experimental import pallas as pl
from jax.experimental.pallas import tpu as pltpu

LANE = 128                       # TPU lane width; each head gets a 128-wide slot.
NEG_INF = -1e30                  # additive mask bias for non-edges.
VMEM_LIMIT = 64 * 1024 * 1024    # explicit scoped-VMEM limit (safe on v5e/v6e/v7x).


def _elementwise_dtype():
    """bf16 elementwise softmax chain on v6e/v7x (bf16 VPU/EUP); f32 elsewhere (v5x)."""
    try:
        kind = jax.devices()[0].device_kind.lower()
    except Exception:
        return jnp.float32
    return jnp.bfloat16 if ("v6" in kind or "v7" in kind) else jnp.float32


# --------------------------------- kernels ----------------------------------

def gat_project_kernel(x_ref, w_ref, h_ref, *, fout):
    """h = x @ W with 128-wide head slots; column `fout` of every slot is set to 1.0 so
    the attention kernel gets the softmax denominator from its aggregation matmul."""
    h = jnp.dot(x_ref[...], w_ref[...], preferred_element_type=jnp.float32)
    col = lax.broadcasted_iota(jnp.int32, h.shape, 1) % LANE
    h = jnp.where(col == fout, 1.0, h)
    h_ref[...] = h.astype(h_ref.dtype)


def gat_attention_kernel(adj_ref, hrow_ref, hall_ref, as_ref, ad_ref, b_ref, out_ref,
                         *, heads, fout, neg_slope, apply_elu, compute_dtype):
    """One GATConv layer for a row tile of destination nodes (full column extent)."""
    cdt = compute_dtype
    zero = jnp.asarray(0.0, cdt)
    ninf = jnp.asarray(NEG_INF, cdt)
    # Additive mask bias, built once per int8 adjacency tile and shared by all heads.
    neg_bias = jnp.where(adj_ref[...] != 0, zero, ninf)                        # [TM, Np]

    h_row = hrow_ref[...]                                                      # [TM, H*128] bf16
    h_all = hall_ref[...]                                                      # [Np, H*128] bf16
    # Stacked attention projections: one MXU push each (not 2H tiny dots).
    dst_all = jnp.dot(h_row, ad_ref[...],
                      preferred_element_type=jnp.float32).astype(cdt)          # [TM, 128]
    src_all = lax.dot_general(as_ref[...], h_all, (((1,), (1,)), ((), ())),
                              preferred_element_type=jnp.float32).astype(cdt)  # [8, Np]

    for hd in range(heads):        # static & small; use lax.fori_loop(unroll=True) if H grows
        sl = slice(hd * LANE, (hd + 1) * LANE)
        # Logits for edges j -> i; mask bias added before LeakyReLU (still ~ -inf after).
        e = dst_all[:, hd:hd + 1] + src_all[hd:hd + 1, :] + neg_bias           # [TM, Np]
        e = jnp.where(e > 0, e, e * neg_slope)                                 # LeakyReLU
        m = jnp.max(e, axis=-1, keepdims=True)
        p = jnp.exp(e - m).astype(jnp.bfloat16)                                # unnormalized
        # Aggregate + row-sum in ONE MXU push (ones column lives at index `fout`).
        agg = jnp.dot(p, h_all[:, sl], preferred_element_type=jnp.float32)     # [TM, 128] f32
        denom = agg[:, fout:fout + 1]                                          # softmax denom
        res = agg * pl.reciprocal(denom) + b_ref[:, sl]                        # exact recip
        if apply_elu:
            res = jnp.where(res > 0, res, jnp.exp(jnp.minimum(res, 0.0)) - 1.0)
        out_ref[:, sl] = res.astype(out_ref.dtype)                             # aligned store


# ------------------------------ pallas wrappers ------------------------------

def _gat_project(x_p, w_p, *, fout, tm):
    n_pad, f_in_pad = x_p.shape
    hf = w_p.shape[1]
    return pl.pallas_call(
        functools.partial(gat_project_kernel, fout=fout),
        out_shape=jax.ShapeDtypeStruct((n_pad, hf), jnp.bfloat16),
        grid=(n_pad // tm,),
        in_specs=[pl.BlockSpec((tm, f_in_pad), lambda i: (i, 0)),
                  pl.BlockSpec((f_in_pad, hf), lambda i: (0, 0))],
        out_specs=pl.BlockSpec((tm, hf), lambda i: (i, 0)),
        compiler_params=pltpu.CompilerParams(
            dimension_semantics=("parallel",), vmem_limit_bytes=VMEM_LIMIT),
    )(x_p, w_p)


def _gat_attention(adj_i8, h_all, src_stack, dst_stack, bias_p, *, heads, fout, tm,
                   apply_elu, out_dtype, compute_dtype, neg_slope=0.2):
    n_pad, hf = h_all.shape
    kernel = functools.partial(
        gat_attention_kernel, heads=heads, fout=fout, neg_slope=neg_slope,
        apply_elu=apply_elu, compute_dtype=compute_dtype)
    return pl.pallas_call(
        kernel,
        out_shape=jax.ShapeDtypeStruct((n_pad, hf), out_dtype),
        grid=(n_pad // tm,),
        in_specs=[pl.BlockSpec((tm, n_pad), lambda i: (i, 0)),        # adj row tile (int8)
                  pl.BlockSpec((tm, hf), lambda i: (i, 0)),           # h, destination rows
                  pl.BlockSpec((n_pad, hf), lambda i: (0, 0)),        # h, all source rows
                  pl.BlockSpec(src_stack.shape, lambda i: (0, 0)),
                  pl.BlockSpec(dst_stack.shape, lambda i: (0, 0)),
                  pl.BlockSpec(bias_p.shape, lambda i: (0, 0))],
        out_specs=pl.BlockSpec((tm, hf), lambda i: (i, 0)),
        compiler_params=pltpu.CompilerParams(
            dimension_semantics=("parallel",), vmem_limit_bytes=VMEM_LIMIT),
    )(adj_i8, h_all, h_all, src_stack, dst_stack, bias_p)


# ------------------------------ host-side packing ----------------------------

def _round_up(v, m):
    return -(-v // m) * m


def _pad_to(a, shape):
    return jnp.pad(a, [(0, t - s) for s, t in zip(a.shape, shape)])


def _pack_w_cols(w, heads, fout):
    """Scatter columns of w [F_in, heads*fout] into 128-wide head slots -> [F_in, heads*128]."""
    f_in = w.shape[0]
    out = jnp.zeros((f_in, heads * LANE), jnp.float32)
    for hd in range(heads):
        out = out.at[:, hd * LANE: hd * LANE + fout].set(w[:, hd * fout:(hd + 1) * fout])
    return out


def _expand_rows(w, heads_in, f_per_head):
    """Scatter rows of w [heads_in*f_per_head, C] into 128-wide input head slots."""
    out = jnp.zeros((heads_in * LANE, w.shape[1]), jnp.float32)
    for hd in range(heads_in):
        out = out.at[hd * LANE: hd * LANE + f_per_head, :].set(
            w[hd * f_per_head:(hd + 1) * f_per_head, :])
    return out


def _pack_att(att_src, att_dst, heads, fout):
    """src_stack [8+, heads*128]: row h = att_src[h] in slot h.
       dst_stack [heads*128, 128]: column h = att_dst[h] in slot h."""
    rows = max(8, _round_up(heads, 8))
    src = jnp.zeros((rows, heads * LANE), jnp.float32)
    dst = jnp.zeros((heads * LANE, LANE), jnp.float32)
    for hd in range(heads):
        src = src.at[hd, hd * LANE: hd * LANE + fout].set(att_src[hd])
        dst = dst.at[hd * LANE: hd * LANE + fout, hd].set(att_dst[hd])
    return src.astype(jnp.bfloat16), dst.astype(jnp.bfloat16)


def _pack_bias(bias, heads, fout):
    out = jnp.zeros((1, heads * LANE), jnp.float32)
    for hd in range(heads):
        out = out.at[0, hd * LANE: hd * LANE + fout].set(bias[hd * fout:(hd + 1) * fout])
    return out


def graph_attention_network(x, edge_index, params):
    """Forward pass matching GraphAttentionNetwork.forward (eval mode)."""
    n, f_in = x.shape
    heads = int(params["num_heads"])
    hid = params["att_src1"].shape[1]
    out_ch = params["att_src2"].shape[1]
    # TODO(synk): the ones-column denominator trick needs one spare padded lane per head
    #             slot; per-head widths >= 128 would need an explicit XLU row-sum instead.
    assert hid < LANE and out_ch < LANE and heads <= LANE

    n_pad = _round_up(n, LANE)
    f_in_pad = _round_up(f_in, LANE)
    tm = 256 if n_pad % 256 == 0 else 128
    cdt = _elementwise_dtype()

    # Densify edge_index -> adj[i, j] = 1 iff edge j -> i; add self-loops for all real
    # nodes (PyG add_self_loops default). Stored int8 (largest HBM input: half the bytes
    # of bf16); duplicate edges dedup, same as the reference.
    adj = jnp.zeros((n_pad, n_pad), jnp.int8)
    adj = adj.at[edge_index[1], edge_index[0]].set(1)
    idx = jnp.arange(n)
    adj = adj.at[idx, idx].set(1)

    x_p = _pad_to(x.astype(jnp.float32), (n_pad, f_in_pad)).astype(jnp.bfloat16)

    # Layer-1 parameters (heads=H, concat=True), packed into 128-wide head slots.
    w1 = _pad_to(_pack_w_cols(params["w1"].astype(jnp.float32), heads, hid),
                 (f_in_pad, heads * LANE)).astype(jnp.bfloat16)
    src1, dst1 = _pack_att(params["att_src1"], params["att_dst1"], heads, hid)
    b1 = _pack_bias(params["bias1"], heads, hid)

    # Layer-2 parameters (heads=1, concat=False -> identity over a single head). Row
    # layout must match layer-1's padded head slots (spare/ones lanes get zero rows).
    w2 = _pack_w_cols(_expand_rows(params["w2"].astype(jnp.float32), heads, hid),
                      1, out_ch).astype(jnp.bfloat16)
    src2, dst2 = _pack_att(params["att_src2"], params["att_dst2"], 1, out_ch)
    b2 = _pack_bias(params["bias2"], 1, out_ch)

    # --- layer 1 (+ fused ELU) ---
    h1 = _gat_project(x_p, w1, fout=hid, tm=tm)
    o1 = _gat_attention(adj, h1, src1, dst1, b1, heads=heads, fout=hid, tm=tm,
                        apply_elu=True, out_dtype=jnp.bfloat16, compute_dtype=cdt)
    # TODO(synk): F.dropout(training=self.training) is identity in eval mode; no RNG here.

    # --- layer 2 ---
    h2 = _gat_project(o1, w2, fout=out_ch, tm=tm)
    o2 = _gat_attention(adj, h2, src2, dst2, b2, heads=1, fout=out_ch, tm=tm,
                        apply_elu=False, out_dtype=jnp.float32, compute_dtype=cdt)

    return o2[:n, :out_ch]


# ------------------------------ pure-JAX reference ---------------------------

def _ref_gat_conv(x, adj, w, att_src, att_dst, bias, num_heads, apply_elu):
    n = x.shape[0]
    hf = w.shape[1]
    f_out = hf // num_heads
    h = (x @ w).reshape(n, num_heads, f_out)
    a_src = jnp.einsum("nhf,hf->nh", h, att_src)
    a_dst = jnp.einsum("nhf,hf->nh", h, att_dst)
    e = a_dst[:, None, :] + a_src[None, :, :]            # e[i, j, h]
    e = jnp.where(e > 0, e, 0.2 * e)
    e = jnp.where(adj[:, :, None] > 0, e, -1e30)
    e = e - jnp.max(e, axis=1, keepdims=True)
    p = jnp.exp(e)
    attn = p / jnp.sum(p, axis=1, keepdims=True)          # softmax over j
    out = jnp.einsum("ijh,jhf->ihf", attn, h).reshape(n, hf) + bias
    if apply_elu:
        out = jnp.where(out > 0, out, jnp.exp(out) - 1.0)
    return out


def _ref_network(x, edge_index, params):
    n = x.shape[0]
    adj = jnp.zeros((n, n), jnp.float32).at[edge_index[1], edge_index[0]].set(1.0)
    adj = jnp.maximum(adj, jnp.eye(n, dtype=jnp.float32))
    h = _ref_gat_conv(x, adj, params["w1"], params["att_src1"], params["att_dst1"],
                      params["bias1"], params["num_heads"], True)
    return _ref_gat_conv(h, adj, params["w2"], params["att_src2"], params["att_dst2"],
                         params["bias2"], 1, False)


# ----------------------------------- main ------------------------------------

if __name__ == "__main__":
    N, IN_CH, HID_CH, OUT_CH, HEADS, E = 16, 8, 8, 4, 4, 40

    key = jax.random.PRNGKey(0)
    keys = jax.random.split(key, 10)

    x = jax.random.normal(keys[0], (N, IN_CH), jnp.float32)
    edge_index = jax.random.randint(keys[1], (2, E), 0, N, jnp.int32)   # [src; dst]

    params = {
        "num_heads": HEADS,
        "w1": jax.random.normal(keys[2], (IN_CH, HEADS * HID_CH), jnp.float32) * 0.2,
        "att_src1": jax.random.normal(keys[3], (HEADS, HID_CH), jnp.float32) * 0.2,
        "att_dst1": jax.random.normal(keys[4], (HEADS, HID_CH), jnp.float32) * 0.2,
        "bias1": jax.random.normal(keys[5], (HEADS * HID_CH,), jnp.float32) * 0.1,
        "w2": jax.random.normal(keys[6], (HEADS * HID_CH, OUT_CH), jnp.float32) * 0.2,
        "att_src2": jax.random.normal(keys[7], (1, OUT_CH), jnp.float32) * 0.2,
        "att_dst2": jax.random.normal(keys[8], (1, OUT_CH), jnp.float32) * 0.2,
        "bias2": jax.random.normal(keys[9], (OUT_CH,), jnp.float32) * 0.1,
    }

    out = graph_attention_network(x, edge_index, params)
    out = jax.block_until_ready(out)
    assert out.shape == (N, OUT_CH), out.shape

    ref = _ref_network(x, edge_index, params)
    max_diff = float(jnp.max(jnp.abs(out - ref)))
    # bf16 MXU operands (+ bf16 elementwise softmax on v6e/v7x) => relaxed tolerance.
    assert jnp.allclose(out, ref, atol=5e-2, rtol=5e-2), f"max abs diff {max_diff}"

    print("KERNEL_OK")
</pallas_src>

<mosaic_0001>
module attributes {stable_mosaic.version = 11 : i64} {
  func.func @gat_project_kernel(%arg0: i32, %arg1: memref<128x128xbf16, #tpu.memory_space<vmem>>, %arg2: memref<128x512xbf16, #tpu.memory_space<vmem>>, %arg3: memref<128x512xbf16, #tpu.memory_space<vmem>>) attributes {dimension_semantics = [#tpu.dimension_semantics<parallel>], iteration_bounds = array<i64: 1>, scalar_prefetch = 0 : i64, scratch_operands = 0 : i64, tpu.core_type = #tpu.core_type<tc>, window_params = [{transform_indices = @transform_0, window_bounds = array<i64: 128, 128>}, {pipeline_mode = #tpu.pipeline_mode<synchronous>, transform_indices = @transform_1, window_bounds = array<i64: 128, 512>}, {transform_indices = @transform_2, window_bounds = array<i64: 128, 512>}]} {
    %c0 = arith.constant 0 : index
    %c0_0 = arith.constant 0 : index
    %0 = vector.load %arg1[%c0, %c0_0] : memref<128x128xbf16, #tpu.memory_space<vmem>>, vector<128x128xbf16>
    %c0_1 = arith.constant 0 : index
    %c0_2 = arith.constant 0 : index
    %1 = vector.load %arg2[%c0_1, %c0_2] : memref<128x512xbf16, #tpu.memory_space<vmem>>, vector<128x512xbf16>
    %cst = arith.constant dense<0.000000e+00> : vector<128x512xf32>
    %2 = tpu.matmul %0, %1, %cst {dimension_numbers = #tpu.dot_dimension_numbers<[1], [0], [0], [1], [0, 0, 1, 1], [], []>} : vector<128x128xbf16>, vector<128x512xbf16>, vector<128x512xf32> -> vector<128x512xf32>
    %3 = tpu.iota {dimensions = array<i32: 1>} : vector<128x512xi32>
    %c128_i32 = arith.constant 128 : i32
    %c0_i32 = arith.constant 0 : i32
    %4 = arith.cmpi eq, %c128_i32, %c0_i32 : i32
    %c1_i32 = arith.constant 1 : i32
    %5 = arith.select %4, %c1_i32, %c128_i32 : i32
    %6 = vector.broadcast %5 : i32 to vector<128x512xi32>
    %7 = arith.remsi %3, %6 : vector<128x512xi32>
    %c0_i32_3 = arith.constant 0 : i32
    %8 = vector.broadcast %c0_i32_3 : i32 to vector<128x512xi32>
    %9 = arith.cmpi ne, %7, %8 : vector<128x512xi32>
    %c0_i32_4 = arith.constant 0 : i32
    %10 = vector.broadcast %c0_i32_4 : i32 to vector<128x512xi32>
    %11 = arith.cmpi slt, %7, %10 : vector<128x512xi32>
    %c0_i32_5 = arith.constant 0 : i32
    %12 = arith.cmpi slt, %5, %c0_i32_5 : i32
    %13 = vector.broadcast %12 : i1 to vector<128x512xi1>
    %14 = vector.broadcast %13 : vector<128x512xi1> to vector<128x512xi1>
    %15 = arith.xori %11, %14 : vector<128x512xi1>
    %16 = arith.andi %15, %9 : vector<128x512xi1>
    %17 = vector.broadcast %5 : i32 to vector<128x512xi32>
    %18 = arith.addi %7, %17 : vector<128x512xi32>
    %19 = arith.select %16, %18, %7 : vector<128x512xi1>, vector<128x512xi32>
    %c8_i32 = arith.constant 8 : i32
    %20 = vector.broadcast %c8_i32 : i32 to vector<128x512xi32>
    %21 = arith.cmpi eq, %19, %20 : vector<128x512xi32>
    %cst_6 = arith.constant 1.000000e+00 : f32
    %22 = vector.broadcast %cst_6 : f32 to vector<128x512xf32>
    %23 = arith.select %21, %22, %2 : vector<128x512xi1>, vector<128x512xf32>
    %24 = arith.truncf %23 : vector<128x512xf32> to vector<128x512xbf16>
    %c0_7 = arith.constant 0 : index
    %c0_8 = arith.constant 0 : index
    %25 = vector.load %arg3[%c0_7, %c0_8] : memref<128x512xbf16, #tpu.memory_space<vmem>>, vector<128x512xbf16>
    tpu.vector_store %arg3[%c0_7, %c0_8], %24 {strides = array<i32>} : memref<128x512xbf16, #tpu.memory_space<vmem>>, vector<128x512xbf16>,
    return
  }
  func.func @transform_0(%arg0: i32) -> (i32, i32) {
    %c0_i32 = arith.constant 0 : i32
    %c0_i32_0 = arith.constant 0 : i32
    return %arg0, %c0_i32 : i32, i32
  }
  func.func @transform_1(%arg0: i32) -> (i32, i32) {
    %c0_i32 = arith.constant 0 : i32
    %c0_i32_0 = arith.constant 0 : i32
    %c0_i32_1 = arith.constant 0 : i32
    return %c0_i32, %c0_i32_0 : i32, i32
  }
  func.func @transform_2(%arg0: i32) -> (i32, i32) {
    %c0_i32 = arith.constant 0 : i32
    %c0_i32_0 = arith.constant 0 : i32
    return %arg0, %c0_i32 : i32, i32
  }
}

</mosaic_0001>

<llo_original>
// kernel: tpu_custom_call.1
$region0: #{tpu_custom_call.1}
  #allocation0 [shape = 'u32[]', space=smem, size = 0x4, offset = 0x4, fixed_abs, tag = 'smem constant byte address 0x4 - core index']
  #allocation1 [shape = 'u32[72,128]{1,0:T(1,128)}', space=vmem, size = 0x9000, scoped, tag = 'internal scratch']
  %s0 = inlined_call_operand.hbm [shape: bf16[128,128], index: 0, kind: input, shape index: {}]
  %s1 = inlined_call_operand.hbm [shape: bf16[128,512], index: 1, kind: input, shape index: {}]
  %s2 = inlined_call_operand.hbm [shape: bf16[128,512], index: 2, kind: output, shape index: {}]
  %s3 = sld [smem:[#allocation0]]
  $region26: #{tpu_custom_call.1} parent=0
    _
  %s5 = ssub.s32 1, %s3
  %s6 = scalar_select 0, %s5, %s3
  $region1: #{tpu_custom_call.1} parent=0
    #allocation2 [shape = 'u8[32768]{0}', space=vmem, size = 0x8000, scoped, tag = 'input window, operand 0, single buffered']
    #allocation3 [shape = 's32[1]{0}', space=sflag, size = 0x4, scoped, tag = 'scoped memory for tpu_custom_call.1']
    #allocation4 [shape = 's32[1]{0}', space=sflag, size = 0x4, scoped, tag = 'scoped memory for tpu_custom_call.1']
    #allocation5 [shape = 'u8[131072]{0}', space=vmem, size = 0x20000, scoped, tag = 'input window, operand 1, single buffered']
    #allocation6 [shape = 's32[1]{0}', space=sflag, size = 0x4, scoped, tag = 'scoped memory for tpu_custom_call.1']
    #allocation7 [shape = 'u8[131072]{0}', space=vmem, size = 0x20000, scoped, tag = 'output window, operand 0, single buffered']
    %7 = vsyncpa [#allocation3], 0
    %8 = vsyncpa [#allocation6], 0
    %9 = vsyncpa [#allocation4], 0
    // Predicated region
    $region2: #{tpu_custom_call.1} parent=1 // pred_check
      _
    $region3: #{tpu_custom_call.1} parent=1 // pred_check_branch
      %11 = sbr.rel (0) target = $region5
    $region4: #{tpu_custom_call.1} parent=1 // pred_region
      %13 = vsyncadd [#allocation3], 0
      %s14 = sshll.u32 %s0, 4
      %s15 = int_to_ptr.hbm [resolvable:$true] %s14
      %s16 = sshll.u32 [#allocation2], 4
      %s17 = int_to_ptr.vmem [resolvable:$true] %s16
      %22 = dma.hbm_to_vmem [thread:$0]  %s15, 1024, %s17, [#allocation3], 64, 64, 4
    $region5: #{tpu_custom_call.1} parent=1 // pred_fallthru
      _
    // Predicated region
    $region6: #{tpu_custom_call.1} parent=1 // pred_check
      _
    $region7: #{tpu_custom_call.1} parent=1 // pred_check_branch
      %24 = sbr.rel (0) target = $region9
    $region8: #{tpu_custom_call.1} parent=1 // pred_region
      %26 = vsyncadd [#allocation6], 0
      %s27 = sshll.u32 %s1, 4
      %s28 = int_to_ptr.hbm [resolvable:$true] %s27
      %s29 = sshll.u32 [#allocation5], 4
      %s30 = int_to_ptr.vmem [resolvable:$true] %s29
      %35 = dma.hbm_to_vmem [thread:$0]  %s28, 4096, %s30, [#allocation6], 256, 256, 16
    $region9: #{tpu_custom_call.1} parent=1 // pred_fallthru
      _
    // Predicated region
    $region10: #{tpu_custom_call.1} parent=1 // pred_check
      _
    $region11: #{tpu_custom_call.1} parent=1 // pred_check_branch
      %37 = sbr.rel (0) target = $region13
    $region12: #{tpu_custom_call.1} parent=1 // pred_region
      %39 = dma.done [#allocation3], 1024
    $region13: #{tpu_custom_call.1} parent=1 // pred_fallthru
      _
    // Predicated region
    $region14: #{tpu_custom_call.1} parent=1 // pred_check
      _
    $region15: #{tpu_custom_call.1} parent=1 // pred_check_branch
      %41 = sbr.rel (0) target = $region17
    $region16: #{tpu_custom_call.1} parent=1 // pred_region
      %43 = dma.done [#allocation6], 4096
    $region17: #{tpu_custom_call.1} parent=1 // pred_fallthru
      _
    %v44 = vld [vmem:[#allocation2] sm:$0xf]
    %v45 = vld [vmem:[#allocation2 + $0x4] sm:$0xf]
    %v46 = vld [vmem:[#allocation2 + $0x8] sm:$0xf]
    %v47 = vld [vmem:[#allocation2 + $0xc] sm:$0xf]
    %v48 = vld [vmem:[#allocation2 + $0x10] sm:$0xf]
    %v49 = vld [vmem:[#allocation2 + $0x14] sm:$0xf]
    %v50 = vld [vmem:[#allocation2 + $0x18] sm:$0xf]
    %v51 = vld [vmem:[#allocation2 + $0x1c] sm:$0xf]
    %v52 = vld [vmem:[#allocation2 + $0x20] sm:$0xf]
    %v53 = vld [vmem:[#allocation2 + $0x24] sm:$0xf]
    %v54 = vld [vmem:[#allocation2 + $0x28] sm:$0xf]
    %v55 = vld [vmem:[#allocation2 + $0x2c] sm:$0xf]
    %v56 = vld [vmem:[#allocation2 + $0x30] sm:$0xf]
    %v57 = vld [vmem:[#allocation2 + $0x34] sm:$0xf]
    %v58 = vld [vmem:[#allocation2 + $0x38] sm:$0xf]
    %v59 = vld [vmem:[#allocation2 + $0x3c] sm:$0xf]
    %v60 = vld [vmem:[#allocation5] sm:$0xff]
    %v61 = vld [vmem:[#allocation5 + $0x8] sm:$0xff]
    %v62 = vld [vmem:[#allocation5 + $0x10] sm:$0xff]
    %v63 = vld [vmem:[#allocation5 + $0x18] sm:$0xff]
    %v64 = vld [vmem:[#allocation5 + $0x20] sm:$0xff]
    %v65 = vld [vmem:[#allocation5 + $0x28] sm:$0xff]
    %v66 = vld [vmem:[#allocation5 + $0x30] sm:$0xff]
    %v67 = vld [vmem:[#allocation5 + $0x38] sm:$0xff]
    %v68 = vld [vmem:[#allocation5 + $0x40] sm:$0xff]
    %v69 = vld [vmem:[#allocation5 + $0x48] sm:$0xff]
    %v70 = vld [vmem:[#allocation5 + $0x50] sm:$0xff]
    %v71 = vld [vmem:[#allocation5 + $0x58] sm:$0xff]
    %v72 = vld [vmem:[#allocation5 + $0x60] sm:$0xff]
    %v73 = vld [vmem:[#allocation5 + $0x68] sm:$0xff]
    %v74 = vld [vmem:[#allocation5 + $0x70] sm:$0xff]
    %v75 = vld [vmem:[#allocation5 + $0x78] sm:$0xff]
    %v76 = vld [vmem:[#allocation5 + $0x80] sm:$0xff]
    %v77 = vld [vmem:[#allocation5 + $0x88] sm:$0xff]
    %v78 = vld [vmem:[#allocation5 + $0x90] sm:$0xff]
    %v79 = vld [vmem:[#allocation5 + $0x98] sm:$0xff]
    %v80 = vld [vmem:[#allocation5 + $0xa0] sm:$0xff]
    %v81 = vld [vmem:[#allocation5 + $0xa8] sm:$0xff]
    %v82 = vld [vmem:[#allocation5 + $0xb0] sm:$0xff]
    %v83 = vld [vmem:[#allocation5 + $0xb8] sm:$0xff]
    %v84 = vld [vmem:[#allocation5 + $0xc0] sm:$0xff]
    %v85 = vld [vmem:[#allocation5 + $0xc8] sm:$0xff]
    %v86 = vld [vmem:[#allocation5 + $0xd0] sm:$0xff]
    %v87 = vld [vmem:[#allocation5 + $0xd8] sm:$0xff]
    %v88 = vld [vmem:[#allocation5 + $0xe0] sm:$0xff]
    %v89 = vld [vmem:[#allocation5 + $0xe8] sm:$0xff]
    %v90 = vld [vmem:[#allocation5 + $0xf0] sm:$0xff]
    %v91 = vld [vmem:[#allocation5 + $0xf8] sm:$0xff]
    %v108 = vunpack.c.l.b16 %v44
    %v109 = vunpack.c.l.b16 %v45
    %v110 = vunpack.c.l.b16 %v46
    %v111 = vunpack.c.l.b16 %v47
    %v112 = vunpack.c.l.b16 %v48
    %v113 = vunpack.c.l.b16 %v49
    %v114 = vunpack.c.l.b16 %v50
    %v115 = vunpack.c.l.b16 %v51
    %v116 = vunpack.c.l.b16 %v52
    %v117 = vunpack.c.l.b16 %v53
    %v118 = vunpack.c.l.b16 %v54
    %v119 = vunpack.c.l.b16 %v55
    %v120 = vunpack.c.l.b16 %v56
    %v121 = vunpack.c.l.b16 %v57
    %v122 = vunpack.c.l.b16 %v58
    %v123 = vunpack.c.l.b16 %v59
    %v124 = vpack.c.b16 %v109, %v108
    %v125 = vpack.c.b16 %v111, %v110
    %v126 = vpack.c.b16 %v113, %v112
    %v127 = vpack.c.b16 %v115, %v114
    %v128 = vpack.c.b16 %v117, %v116
    %v129 = vpack.c.b16 %v119, %v118
    %v130 = vpack.c.b16 %v121, %v120
    %v131 = vpack.c.b16 %v123, %v122
    %v172 = vunpack.c.l.b16 %v60
    %v173 = vunpack.c.h.b16 %v60
    %v174 = vunpack.c.l.b16 %v61
    %v175 = vunpack.c.h.b16 %v61
    %v176 = vunpack.c.l.b16 %v62
    %v177 = vunpack.c.h.b16 %v62
    %v178 = vunpack.c.l.b16 %v63
    %v179 = vunpack.c.h.b16 %v63
    %v180 = vunpack.c.l.b16 %v64
    %v181 = vunpack.c.h.b16 %v64
    %v182 = vunpack.c.l.b16 %v65
    %v183 = vunpack.c.h.b16 %v65
    %v184 = vunpack.c.l.b16 %v66
    %v185 = vunpack.c.h.b16 %v66
    %v186 = vunpack.c.l.b16 %v67
    %v187 = vunpack.c.h.b16 %v67
    %v188 = vunpack.c.l.b16 %v68
    %v189 = vunpack.c.h.b16 %v68
    %v190 = vunpack.c.l.b16 %v69
    %v191 = vunpack.c.h.b16 %v69
    %v192 = vunpack.c.l.b16 %v70
    %v193 = vunpack.c.h.b16 %v70
    %v194 = vunpack.c.l.b16 %v71
    %v195 = vunpack.c.h.b16 %v71
    %v196 = vunpack.c.l.b16 %v72
    %v197 = vunpack.c.h.b16 %v72
    %v198 = vunpack.c.l.b16 %v73
    %v199 = vunpack.c.h.b16 %v73
    %v200 = vunpack.c.l.b16 %v74
    %v201 = vunpack.c.h.b16 %v74
    %v202 = vunpack.c.l.b16 %v75
    %v203 = vunpack.c.h.b16 %v75
    %v204 = vunpack.c.l.b16 %v76
    %v205 = vunpack.c.h.b16 %v76
    %v206 = vunpack.c.l.b16 %v77
    %v207 = vunpack.c.h.b16 %v77
    %v208 = vunpack.c.l.b16 %v78
    %v209 = vunpack.c.h.b16 %v78
    %v210 = vunpack.c.l.b16 %v79
    %v211 = vunpack.c.h.b16 %v79
    %v212 = vunpack.c.l.b16 %v80
    %v213 = vunpack.c.h.b16 %v80
    %v214 = vunpack.c.l.b16 %v81
    %v215 = vunpack.c.h.b16 %v81
    %v216 = vunpack.c.l.b16 %v82
    %v217 = vunpack.c.h.b16 %v82
    %v218 = vunpack.c.l.b16 %v83
    %v219 = vunpack.c.h.b16 %v83
    %v220 = vunpack.c.l.b16 %v84
    %v221 = vunpack.c.h.b16 %v84
    %v222 = vunpack.c.l.b16 %v85
    %v223 = vunpack.c.h.b16 %v85
    %v224 = vunpack.c.l.b16 %v86
    %v225 = vunpack.c.h.b16 %v86
    %v226 = vunpack.c.l.b16 %v87
    %v227 = vunpack.c.h.b16 %v87
    %v228 = vunpack.c.l.b16 %v88
    %v229 = vunpack.c.h.b16 %v88
    %v230 = vunpack.c.l.b16 %v89
    %v231 = vunpack.c.h.b16 %v89
    %v232 = vunpack.c.l.b16 %v90
    %v233 = vunpack.c.h.b16 %v90
    %v234 = vunpack.c.l.b16 %v91
    %v235 = vunpack.c.h.b16 %v91
    %v236 = vpack.c.b16 %v176, %v172
    %v237 = vpack.c.b16 %v177, %v173
    %v238 = vpack.c.b16 %v178, %v174
    %v239 = vpack.c.b16 %v179, %v175
    %v240 = vpack.c.b16 %v184, %v180
    %v241 = vpack.c.b16 %v185, %v181
    %v242 = vpack.c.b16 %v186, %v182
    %v243 = vpack.c.b16 %v187, %v183
    %v244 = vpack.c.b16 %v192, %v188
    %v245 = vpack.c.b16 %v193, %v189
    %v246 = vpack.c.b16 %v194, %v190
    %v247 = vpack.c.b16 %v195, %v191
    %v248 = vpack.c.b16 %v200, %v196
    %v249 = vpack.c.b16 %v201, %v197
    %v250 = vpack.c.b16 %v202, %v198
    %v251 = vpack.c.b16 %v203, %v199
    %v252 = vpack.c.b16 %v208, %v204
    %v253 = vpack.c.b16 %v209, %v205
    %v254 = vpack.c.b16 %v210, %v206
    %v255 = vpack.c.b16 %v211, %v207
    %v256 = vpack.c.b16 %v216, %v212
    %v257 = vpack.c.b16 %v217, %v213
    %v258 = vpack.c.b16 %v218, %v214
    %v259 = vpack.c.b16 %v219, %v215
    %v260 = vpack.c.b16 %v224, %v220
    %v261 = vpack.c.b16 %v225, %v221
    %v262 = vpack.c.b16 %v226, %v222
    %v263 = vpack.c.b16 %v227, %v223
    %v264 = vpack.c.b16 %v232, %v228
    %v265 = vpack.c.b16 %v233, %v229
    %v266 = vpack.c.b16 %v234, %v230
    %v267 = vpack.c.b16 %v235, %v231
    %300 = vmatpush.bf16.msra.mxu0 %v264
    %301 = vmatpush.bf16.msra.mxu0 %v260
    %302 = vmatpush.bf16.msra.mxu0 %v256
    %303 = vmatpush.bf16.msra.mxu0 %v252
    %304 = vmatpush.bf16.msra.mxu0 %v248
    %305 = vmatpush.bf16.msra.mxu0 %v244
    %306 = vmatpush.bf16.msra.mxu0 %v240
    %307 = vmatpush.bf16.msra.mxu0 %v236
    %308 = vmatmul.bf16.gmra.mxu0 %v124
    %v309 = vpop.f32.mrf.mxu0
    %v310 = vadd.f32 0.0, %v309
    %v311 = vpop.f32.mrf.mxu0
    %v312 = vadd.f32 0.0, %v311
    %313 = vmatmul.bf16.gmra.mxu0 %v125
    %v314 = vpop.f32.mrf.mxu0
    %v315 = vadd.f32 0.0, %v314
    %v316 = vpop.f32.mrf.mxu0
    %v317 = vadd.f32 0.0, %v316
    %318 = vmatmul.bf16.gmra.mxu0 %v126
    %v319 = vpop.f32.mrf.mxu0
    %v320 = vadd.f32 0.0, %v319
    %v321 = vpop.f32.mrf.mxu0
    %v322 = vadd.f32 0.0, %v321
    %323 = vmatmul.bf16.gmra.mxu0 %v127
    %v324 = vpop.f32.mrf.mxu0
    %v325 = vadd.f32 0.0, %v324
    %v326 = vpop.f32.mrf.mxu0
    %v327 = vadd.f32 0.0, %v326
    %328 = vmatmul.bf16.gmra.mxu0 %v128
    %v329 = vpop.f32.mrf.mxu0
    %v330 = vadd.f32 0.0, %v329
    %v331 = vpop.f32.mrf.mxu0
    %v332 = vadd.f32 0.0, %v331
    %333 = vmatmul.bf16.gmra.mxu0 %v129
    %v334 = vpop.f32.mrf.mxu0
    %v335 = vadd.f32 0.0, %v334
    %v336 = vpop.f32.mrf.mxu0
    %v337 = vadd.f32 0.0, %v336
    %338 = vmatmul.bf16.gmra.mxu0 %v130
    %v339 = vpop.f32.mrf.mxu0
    %v340 = vadd.f32 0.0, %v339
    %v341 = vpop.f32.mrf.mxu0
    %v342 = vadd.f32 0.0, %v341
    %343 = vmatmul.bf16.gmra.mxu0 %v131
    %v344 = vpop.f32.mrf.mxu0
    %v345 = vadd.f32 0.0, %v344
    %v346 = vpop.f32.mrf.mxu0
    %v347 = vadd.f32 0.0, %v346
    %348 = vdwg.mxu0
    %349 = vmatpush.bf16.msra.mxu0 %v265
    %350 = vmatpush.bf16.msra.mxu0 %v261
    %351 = vmatpush.bf16.msra.mxu0 %v257
    %352 = vmatpush.bf16.msra.mxu0 %v253
    %353 = vmatpush.bf16.msra.mxu0 %v249
    %354 = vmatpush.bf16.msra.mxu0 %v245
    %355 = vmatpush.bf16.msra.mxu0 %v241
    %356 = vmatpush.bf16.msra.mxu0 %v237
    %357 = vmatmul.bf16.gmra.mxu0 %v124
    %v358 = vpop.f32.mrf.mxu0
    %v359 = vadd.f32 0.0, %v358
    %v360 = vpop.f32.mrf.mxu0
    %v361 = vadd.f32 0.0, %v360
    %362 = vmatmul.bf16.gmra.mxu0 %v125
    %v363 = vpop.f32.mrf.mxu0
    %v364 = vadd.f32 0.0, %v363
    %v365 = vpop.f32.mrf.mxu0
    %v366 = vadd.f32 0.0, %v365
    %367 = vmatmul.bf16.gmra.mxu0 %v126
    %v368 = vpop.f32.mrf.mxu0
    %v369 = vadd.f32 0.0, %v368
    %v370 = vpop.f32.mrf.mxu0
    %v371 = vadd.f32 0.0, %v370
    %372 = vmatmul.bf16.gmra.mxu0 %v127
    %v373 = vpop.f32.mrf.mxu0
    %v374 = vadd.f32 0.0, %v373
    %v375 = vpop.f32.mrf.mxu0
    %v376 = vadd.f32 0.0, %v375
    %377 = vmatmul.bf16.gmra.mxu0 %v128
    %v378 = vpop.f32.mrf.mxu0
    %v379 = vadd.f32 0.0, %v378
    %v380 = vpop.f32.mrf.mxu0
    %v381 = vadd.f32 0.0, %v380
    %382 = vmatmul.bf16.gmra.mxu0 %v129
    %v383 = vpop.f32.mrf.mxu0
    %v384 = vadd.f32 0.0, %v383
    %v385 = vpop.f32.mrf.mxu0
    %v386 = vadd.f32 0.0, %v385
    %387 = vmatmul.bf16.gmra.mxu0 %v130
    %v388 = vpop.f32.mrf.mxu0
    %v389 = vadd.f32 0.0, %v388
    %v390 = vpop.f32.mrf.mxu0
    %v391 = vadd.f32 0.0, %v390
    %392 = vmatmul.bf16.gmra.mxu0 %v131
    %v393 = vpop.f32.mrf.mxu0
    %v394 = vadd.f32 0.0, %v393
    %v395 = vpop.f32.mrf.mxu0
    %v396 = vadd.f32 0.0, %v395
    %397 = vdwg.mxu0
    %398 = vmatpush.bf16.msra.mxu0 %v266
    %399 = vmatpush.bf16.msra.mxu0 %v262
    %400 = vmatpush.bf16.msra.mxu0 %v258
    %401 = vmatpush.bf16.msra.mxu0 %v254
    %402 = vmatpush.bf16.msra.mxu0 %v250
    %403 = vmatpush.bf16.msra.mxu0 %v246
    %404 = vmatpush.bf16.msra.mxu0 %v242
    %405 = vmatpush.bf16.msra.mxu0 %v238
    %406 = vmatmul.bf16.gmra.mxu0 %v124
    %v407 = vpop.f32.mrf.mxu0
    %v408 = vadd.f32 0.0, %v407
    %v409 = vpop.f32.mrf.mxu0
    %v410 = vadd.f32 0.0, %v409
    %411 = vmatmul.bf16.gmra.mxu0 %v125
    %v412 = vpop.f32.mrf.mxu0
    %v413 = vadd.f32 0.0, %v412
    %v414 = vpop.f32.mrf.mxu0
    %v415 = vadd.f32 0.0, %v414
    %416 = vmatmul.bf16.gmra.mxu0 %v126
    %v417 = vpop.f32.mrf.mxu0
    %v418 = vadd.f32 0.0, %v417
    %v419 = vpop.f32.mrf.mxu0
    %v420 = vadd.f32 0.0, %v419
    %421 = vmatmul.bf16.gmra.mxu0 %v127
    %v422 = vpop.f32.mrf.mxu0
    %v423 = vadd.f32 0.0, %v422
    %v424 = vpop.f32.mrf.mxu0
    %v425 = vadd.f32 0.0, %v424
    %426 = vmatmul.bf16.gmra.mxu0 %v128
    %v427 = vpop.f32.mrf.mxu0
    %v428 = vadd.f32 0.0, %v427
    %v429 = vpop.f32.mrf.mxu0
    %v430 = vadd.f32 0.0, %v429
    %431 = vmatmul.bf16.gmra.mxu0 %v129
    %v432 = vpop.f32.mrf.mxu0
    %v433 = vadd.f32 0.0, %v432
    %v434 = vpop.f32.mrf.mxu0
    %v435 = vadd.f32 0.0, %v434
    %436 = vmatmul.bf16.gmra.mxu0 %v130
    %v437 = vpop.f32.mrf.mxu0
    %v438 = vadd.f32 0.0, %v437
    %v439 = vpop.f32.mrf.mxu0
    %v440 = vadd.f32 0.0, %v439
    %441 = vmatmul.bf16.gmra.mxu0 %v131
    %v442 = vpop.f32.mrf.mxu0
    %v443 = vadd.f32 0.0, %v442
    %v444 = vpop.f32.mrf.mxu0
    %v445 = vadd.f32 0.0, %v444
    %446 = vdwg.mxu0
    %447 = vmatpush.bf16.msra.mxu0 %v267
    %448 = vmatpush.bf16.msra.mxu0 %v263
    %449 = vmatpush.bf16.msra.mxu0 %v259
    %450 = vmatpush.bf16.msra.mxu0 %v255
    %451 = vmatpush.bf16.msra.mxu0 %v251
    %452 = vmatpush.bf16.msra.mxu0 %v247
    %453 = vmatpush.bf16.msra.mxu0 %v243
    %454 = vmatpush.bf16.msra.mxu0 %v239
    %455 = vmatmul.bf16.gmra.mxu0 %v124
    %v456 = vpop.f32.mrf.mxu0
    %v457 = vadd.f32 0.0, %v456
    %v458 = vpop.f32.mrf.mxu0
    %v459 = vadd.f32 0.0, %v458
    %460 = vmatmul.bf16.gmra.mxu0 %v125
    %v461 = vpop.f32.mrf.mxu0
    %v462 = vadd.f32 0.0, %v461
    %v463 = vpop.f32.mrf.mxu0
    %v464 = vadd.f32 0.0, %v463
    %465 = vmatmul.bf16.gmra.mxu0 %v126
    %v466 = vpop.f32.mrf.mxu0
    %v467 = vadd.f32 0.0, %v466
    %v468 = vpop.f32.mrf.mxu0
    %v469 = vadd.f32 0.0, %v468
    %470 = vmatmul.bf16.gmra.mxu0 %v127
    %v471 = vpop.f32.mrf.mxu0
    %v472 = vadd.f32 0.0, %v471
    %v473 = vpop.f32.mrf.mxu0
    %v474 = vadd.f32 0.0, %v473
    %475 = vmatmul.bf16.gmra.mxu0 %v128
    %v476 = vpop.f32.mrf.mxu0
    %v477 = vadd.f32 0.0, %v476
    %v478 = vpop.f32.mrf.mxu0
    %v479 = vadd.f32 0.0, %v478
    %480 = vmatmul.bf16.gmra.mxu0 %v129
    %v481 = vpop.f32.mrf.mxu0
    %v482 = vadd.f32 0.0, %v481
    %v483 = vpop.f32.mrf.mxu0
    %v484 = vadd.f32 0.0, %v483
    %485 = vmatmul.bf16.gmra.mxu0 %v130
    %v486 = vpop.f32.mrf.mxu0
    %v487 = vadd.f32 0.0, %v486
    %v488 = vpop.f32.mrf.mxu0
    %v489 = vadd.f32 0.0, %v488
    %490 = vmatmul.bf16.gmra.mxu0 %v131
    %v491 = vpop.f32.mrf.mxu0
    %v492 = vadd.f32 0.0, %v491
    %v493 = vpop.f32.mrf.mxu0
    %v494 = vadd.f32 0.0, %v493
    %495 = vdwg.mxu0
    %v496 = vlaneseq
    %v497 = vand.u32 %v496, 127
    %v498 = vadd.s32 %v497, 128
    %v499 = vadd.s32 %v497, 256
    %v500 = vadd.s32 %v497, 384
    %vm501 = vcmp.lt.s32.totalorder %v497, 0
    %v502 = vsub.s32 0, %v497
    %v503 = vsel %vm501, %v502, %v497
    %v504 = vshrl.u32 %v503, 7
    %v505 = vand.u32 %v503, 127
    %v506 = vsub.s32 0, %v505
    %v507 = vsel %vm501, %v506, %v505
    %vm508 = vcmp.lt.s32.totalorder %v498, 0
    %v509 = vsub.s32 0, %v498
    %v510 = vsel %vm508, %v509, %v498
    %v511 = vshrl.u32 %v510, 7
    %v512 = vand.u32 %v510, 127
    %v513 = vsub.s32 0, %v512
    %v514 = vsel %vm508, %v513, %v512
    %vm515 = vcmp.lt.s32.totalorder %v499, 0
    %v516 = vsub.s32 0, %v499
    %v517 = vsel %vm515, %v516, %v499
    %v518 = vshrl.u32 %v517, 7
    %v519 = vand.u32 %v517, 127
    %v520 = vsub.s32 0, %v519
    %v521 = vsel %vm515, %v520, %v519
    %vm522 = vcmp.lt.s32.totalorder %v500, 0
    %v523 = vsub.s32 0, %v500
    %v524 = vsel %vm522, %v523, %v500
    %v525 = vshrl.u32 %v524, 7
    %v526 = vand.u32 %v524, 127
    %v527 = vsub.s32 0, %v526
    %v528 = vsel %vm522, %v527, %v526
    %vm529 = vcmp.ne.s32.totalorder %v507, 0
    %vm530 = vcmp.ne.s32.totalorder %v514, 0
    %vm531 = vcmp.ne.s32.totalorder %v521, 0
    %vm532 = vcmp.ne.s32.totalorder %v528, 0
    %vm533 = vcmp.lt.s32.totalorder %v507, 0
    %vm534 = vcmp.lt.s32.totalorder %v514, 0
    %vm535 = vcmp.lt.s32.totalorder %v521, 0
    %vm536 = vcmp.lt.s32.totalorder %v528, 0
    %vm537 = vmand %vm533, %vm529
    %vm538 = vmand %vm534, %vm530
    %vm539 = vmand %vm535, %vm531
    %vm540 = vmand %vm536, %vm532
    %v541 = vadd.s32 %v507, 128
    %v542 = vadd.s32 %v514, 128
    %v543 = vadd.s32 %v521, 128
    %v544 = vadd.s32 %v528, 128
    %v545 = vsel %vm537, %v541, %v507
    %v546 = vsel %vm538, %v542, %v514
    %v547 = vsel %vm539, %v543, %v521
    %v548 = vsel %vm540, %v544, %v528
    %vm549 = vcmp.eq.s32.totalorder %v545, 8
    %vm550 = vcmp.eq.s32.totalorder %v546, 8
    %vm551 = vcmp.eq.s32.totalorder %v547, 8
    %vm552 = vcmp.eq.s32.totalorder %v548, 8
    %v553 = vsel %vm549, 1.0, %v310
    %v554 = vsel %vm550, 1.0, %v359
    %v555 = vsel %vm551, 1.0, %v408
    %v556 = vsel %vm552, 1.0, %v457
    %v557 = vsel %vm549, 1.0, %v312
    %v558 = vsel %vm550, 1.0, %v361
    %v559 = vsel %vm551, 1.0, %v410
    %v560 = vsel %vm552, 1.0, %v459
    %v561 = vsel %vm549, 1.0, %v315
    %v562 = vsel %vm550, 1.0, %v364
    %v563 = vsel %vm551, 1.0, %v413
    %v564 = vsel %vm552, 1.0, %v462
    %v565 = vsel %vm549, 1.0, %v317
    %v566 = vsel %vm550, 1.0, %v366
    %v567 = vsel %vm551, 1.0, %v415
    %v568 = vsel %vm552, 1.0, %v464
    %v569 = vsel %vm549, 1.0, %v320
    %v570 = vsel %vm550, 1.0, %v369
    %v571 = vsel %vm551, 1.0, %v418
    %v572 = vsel %vm552, 1.0, %v467
    %v573 = vsel %vm549, 1.0, %v322
    %v574 = vsel %vm550, 1.0, %v371
    %v575 = vsel %vm551, 1.0, %v420
    %v576 = vsel %vm552, 1.0, %v469
    %v577 = vsel %vm549, 1.0, %v325
    %v578 = vsel %vm550, 1.0, %v374
    %v579 = vsel %vm551, 1.0, %v423
    %v580 = vsel %vm552, 1.0, %v472
    %v581 = vsel %vm549, 1.0, %v327
    %v582 = vsel %vm550, 1.0, %v376
    %v583 = vsel %vm551, 1.0, %v425
    %v584 = vsel %vm552, 1.0, %v474
    %v585 = vsel %vm549, 1.0, %v330
    %v586 = vsel %vm550, 1.0, %v379
    %v587 = vsel %vm551, 1.0, %v428
    %v588 = vsel %vm552, 1.0, %v477
    %v589 = vsel %vm549, 1.0, %v332
    %v590 = vsel %vm550, 1.0, %v381
    %v591 = vsel %vm551, 1.0, %v430
    %v592 = vsel %vm552, 1.0, %v479
    %v593 = vsel %vm549, 1.0, %v335
    %v594 = vsel %vm550, 1.0, %v384
    %v595 = vsel %vm551, 1.0, %v433
    %v596 = vsel %vm552, 1.0, %v482
    %v597 = vsel %vm549, 1.0, %v337
    %v598 = vsel %vm550, 1.0, %v386
    %v599 = vsel %vm551, 1.0, %v435
    %v600 = vsel %vm552, 1.0, %v484
    %v601 = vsel %vm549, 1.0, %v340
    %v602 = vsel %vm550, 1.0, %v389
    %v603 = vsel %vm551, 1.0, %v438
    %v604 = vsel %vm552, 1.0, %v487
    %v605 = vsel %vm549, 1.0, %v342
    %v606 = vsel %vm550, 1.0, %v391
    %v607 = vsel %vm551, 1.0, %v440
    %v608 = vsel %vm552, 1.0, %v489
    %v609 = vsel %vm549, 1.0, %v345
    %v610 = vsel %vm550, 1.0, %v394
    %v611 = vsel %vm551, 1.0, %v443
    %v612 = vsel %vm552, 1.0, %v492
    %v613 = vsel %vm549, 1.0, %v347
    %v614 = vsel %vm550, 1.0, %v396
    %v615 = vsel %vm551, 1.0, %v445
    %v616 = vsel %vm552, 1.0, %v494
    %v617 = vpack.c.bf16 %v554, %v553
    %v618 = vpack.c.bf16 %v556, %v555
    %v619 = vpack.c.bf16 %v558, %v557
    %v620 = vpack.c.bf16 %v560, %v559
    %v621 = vpack.c.bf16 %v562, %v561
    %v622 = vpack.c.bf16 %v564, %v563
    %v623 = vpack.c.bf16 %v566, %v565
    %v624 = vpack.c.bf16 %v568, %v567
    %v625 = vpack.c.bf16 %v570, %v569
    %v626 = vpack.c.bf16 %v572, %v571
    %v627 = vpack.c.bf16 %v574, %v573
    %v628 = vpack.c.bf16 %v576, %v575
    %v629 = vpack.c.bf16 %v578, %v577
    %v630 = vpack.c.bf16 %v580, %v579
    %v631 = vpack.c.bf16 %v582, %v581
    %v632 = vpack.c.bf16 %v584, %v583
    %v633 = vpack.c.bf16 %v586, %v585
    %v634 = vpack.c.bf16 %v588, %v587
    %v635 = vpack.c.bf16 %v590, %v589
    %v636 = vpack.c.bf16 %v592, %v591
    %v637 = vpack.c.bf16 %v594, %v593
    %v638 = vpack.c.bf16 %v596, %v595
    %v639 = vpack.c.bf16 %v598, %v597
    %v640 = vpack.c.bf16 %v600, %v599
    %v641 = vpack.c.bf16 %v602, %v601
    %v642 = vpack.c.bf16 %v604, %v603
    %v643 = vpack.c.bf16 %v606, %v605
    %v644 = vpack.c.bf16 %v608, %v607
    %v645 = vpack.c.bf16 %v610, %v609
    %v646 = vpack.c.bf16 %v612, %v611
    %v647 = vpack.c.bf16 %v614, %v613
    %v648 = vpack.c.bf16 %v616, %v615
    %649 = vst [vmem:[#allocation7] sm:$0xff] %v617
    %650 = vst [vmem:[#allocation7 + $0x8] sm:$0xff] %v618
    %651 = vst [vmem:[#allocation7 + $0x10] sm:$0xff] %v619
    %652 = vst [vmem:[#allocation7 + $0x18] sm:$0xff] %v620
    %653 = vst [vmem:[#allocation7 + $0x20] sm:$0xff] %v621
    %654 = vst [vmem:[#allocation7 + $0x28] sm:$0xff] %v622
    %655 = vst [vmem:[#allocation7 + $0x30] sm:$0xff] %v623
    %656 = vst [vmem:[#allocation7 + $0x38] sm:$0xff] %v624
    %657 = vst [vmem:[#allocation7 + $0x40] sm:$0xff] %v625
    %658 = vst [vmem:[#allocation7 + $0x48] sm:$0xff] %v626
    %659 = vst [vmem:[#allocation7 + $0x50] sm:$0xff] %v627
    %660 = vst [vmem:[#allocation7 + $0x58] sm:$0xff] %v628
    %661 = vst [vmem:[#allocation7 + $0x60] sm:$0xff] %v629
    %662 = vst [vmem:[#allocation7 + $0x68] sm:$0xff] %v630
    %663 = vst [vmem:[#allocation7 + $0x70] sm:$0xff] %v631
    %664 = vst [vmem:[#allocation7 + $0x78] sm:$0xff] %v632
    %665 = vst [vmem:[#allocation7 + $0x80] sm:$0xff] %v633
    %666 = vst [vmem:[#allocation7 + $0x88] sm:$0xff] %v634
    %667 = vst [vmem:[#allocation7 + $0x90] sm:$0xff] %v635
    %668 = vst [vmem:[#allocation7 + $0x98] sm:$0xff] %v636
    %669 = vst [vmem:[#allocation7 + $0xa0] sm:$0xff] %v637
    %670 = vst [vmem:[#allocation7 + $0xa8] sm:$0xff] %v638
    %671 = vst [vmem:[#allocation7 + $0xb0] sm:$0xff] %v639
    %672 = vst [vmem:[#allocation7 + $0xb8] sm:$0xff] %v640
    %673 = vst [vmem:[#allocation7 + $0xc0] sm:$0xff] %v641
    %674 = vst [vmem:[#allocation7 + $0xc8] sm:$0xff] %v642
    %675 = vst [vmem:[#allocation7 + $0xd0] sm:$0xff] %v643
    %676 = vst [vmem:[#allocation7 + $0xd8] sm:$0xff] %v644
    %677 = vst [vmem:[#allocation7 + $0xe0] sm:$0xff] %v645
    %678 = vst [vmem:[#allocation7 + $0xe8] sm:$0xff] %v646
    %679 = vst [vmem:[#allocation7 + $0xf0] sm:$0xff] %v647
    %680 = vst [vmem:[#allocation7 + $0xf8] sm:$0xff] %v648
    // Predicated region
    $region18: #{tpu_custom_call.1} parent=1 // pred_check
      _
    $region19: #{tpu_custom_call.1} parent=1 // pred_check_branch
      %682 = sbr.rel (0) target = $region21
    $region20: #{tpu_custom_call.1} parent=1 // pred_region
      %684 = vsyncadd [#allocation4], 0
      %s685 = sshll.u32 [#allocation7], 4
      %s686 = int_to_ptr.vmem [resolvable:$true] %s685
      %s687 = sshll.u32 %s2, 4
      %s688 = int_to_ptr.hbm [resolvable:$true] %s687
      %693 = dma.vmem_to_hbm [thread:$0]  %s686, 4096, %s688, [#allocation4], 256, 256, 16
    $region21: #{tpu_custom_call.1} parent=1 // pred_fallthru
      _
    // Predicated region
    $region22: #{tpu_custom_call.1} parent=1 // pred_check
      _
    $region23: #{tpu_custom_call.1} parent=1 // pred_check_branch
      %695 = sbr.rel (0) target = $region25
    $region24: #{tpu_custom_call.1} parent=1 // pred_region
      %697 = dma.done [#allocation4], 4096
    $region25: #{tpu_custom_call.1} parent=1 // pred_fallthru
      _
    %698 = vsyncpa [#allocation3], 1
    %699 = vsyncpa [#allocation6], 1
    %700 = vsyncpa [#allocation4], 1

</llo_original>
